<compile_context>
chip_gen: v7x
topology: tpu7x:2x2x1
jax: 0.10.0
libtpu: 0.0.40
codegen_flags: <defaults>
</compile_context>

<pallas_src>
import jax
import jax.numpy as jnp
from jax.experimental import pallas as pl
from jax.experimental.pallas import tpu as pltpu

# ----- model config (matches TextCNN.__init__ semantics, small shapes) -----
VOCAB_SIZE = 50
EMBED_DIM = 32
NUM_CLASSES = 4
NUM_FILTERS = 8
FILTER_SIZES = (2, 3, 4)
BATCH = 2
SEQ_LEN = 16

FC_IN = NUM_FILTERS * len(FILTER_SIZES)      # 24 valid feature columns
MAX_FS = max(FILTER_SIZES)                   # 4 taps
LANES = 128                                  # lane-dense padding target
VOCAB_PAD = 64                               # vocab padded with zero rows
B_PAD = ((BATCH + 7) // 8) * 8               # 8 -> full (8,128) output tile
ROWS = B_PAD * SEQ_LEN                       # 128 flattened (padded) token positions
K_FOLD = MAX_FS * VOCAB_PAD                  # 256 contraction dim of the fused matmul
BL = BATCH * SEQ_LEN                         # 32 real token positions


def textcnn_kernel(onehot_ref, wfold_ref, bcol_ref, mask_ref, wfc_ref, bfc_ref, out_ref):
    # 1) Embedding + im2col + all Conv1d's in ONE MXU matmul (table folded into weights):
    #    (ROWS, K_FOLD) bf16 @ (K_FOLD, LANES) bf16 -> f32. Cols [0, FC_IN) are valid.
    conv = jnp.dot(onehot_ref[...], wfold_ref[...],
                   preferred_element_type=jnp.float32)                  # (ROWS, LANES) f32

    # 2) Bias + ReLU (f32 VPU), then zero invalid time positions (t >= L - fs + 1).
    #    Masking to 0 after ReLU is exact: valid ReLU values are >= 0 and every filter
    #    has at least one valid time step (SEQ_LEN >= MAX_FS).
    conv = jnp.maximum(conv + bcol_ref[...], 0.0)
    conv = conv.reshape(B_PAD, SEQ_LEN, LANES) * mask_ref[...][None, :, :]  # tile-aligned reshape

    # 3) Max-pool over time per batch element -> (B_PAD, LANES): single XLU sublane reduce.
    pooled = jnp.max(conv, axis=1)

    # TODO(synk): dropout(p=0.5) implemented as identity (eval mode); training-mode PRNG mask omitted.

    # 4) FC: (B_PAD, LANES) @ (LANES, LANES) + bias; padded rows/cols of W_fc are zero.
    #    Full (8,128) tile store (no masked partial store).
    out_ref[...] = (jnp.dot(pooled.astype(jnp.bfloat16), wfc_ref[...],
                            preferred_element_type=jnp.float32)
                    + bfc_ref[...])


def pack_params(params):
    """One-time weight packing: fold embedding table into per-tap conv weights (lane-dense)."""
    E, F = EMBED_DIM, NUM_FILTERS
    table = jnp.zeros((VOCAB_PAD, E), jnp.float32).at[:VOCAB_SIZE].set(params["embedding"])

    w_col = jnp.zeros((MAX_FS * E, LANES), jnp.float32)       # per-tap conv weight blocks
    b_col = jnp.zeros((1, LANES), jnp.float32)
    limit = jnp.zeros((LANES,), jnp.int32)                    # valid time length per output column
    for i, fs in enumerate(FILTER_SIZES):
        for k in range(fs):
            # conv_w[i] is (fs, E, F): pre-transposed PyTorch Conv1d weight (F, E, fs).
            w_col = w_col.at[k * E:(k + 1) * E, i * F:(i + 1) * F].set(params["conv_w"][i][k])
        b_col = b_col.at[0, i * F:(i + 1) * F].set(params["conv_b"][i])
        limit = limit.at[i * F:(i + 1) * F].set(SEQ_LEN - fs + 1)

    # Fold the embedding table into each tap block (done in f32, cast once to bf16).
    w_fold = jnp.concatenate(
        [table @ w_col[k * E:(k + 1) * E, :] for k in range(MAX_FS)], axis=0)  # (K_FOLD, LANES)

    # Time-validity mask, stored only per time step (broadcast over batch in-kernel).
    t = jnp.arange(SEQ_LEN, dtype=jnp.int32)
    mask = (t[:, None] < limit[None, :]).astype(jnp.float32)                   # (SEQ_LEN, LANES)

    w_fc = jnp.zeros((LANES, LANES), jnp.float32).at[:FC_IN, :NUM_CLASSES].set(params["fc_w"])
    b_fc = jnp.zeros((1, LANES), jnp.float32).at[0, :NUM_CLASSES].set(params["fc_b"])
    return {
        "w_fold": w_fold.astype(jnp.bfloat16),
        "b_col": b_col,
        "mask": mask,
        "w_fc": w_fc.astype(jnp.bfloat16),
        "b_fc": b_fc,
    }


def _build_shifted_onehot(tokens):
    """Lane-dense shifted one-hot: column block k, row r encodes token at flat position r+k.

    Exactness across batch/padding boundaries: any (row, filter) pair whose taps would
    cross a sequence boundary is zeroed by the post-ReLU time mask, and taps k >= fs_i
    hit all-zero weight columns, so the spill-over rows never contribute.
    """
    tok_flat = tokens.reshape(-1).astype(jnp.int32)                              # (BL,)
    tok_pad = jnp.full((ROWS + MAX_FS - 1,), -1, jnp.int32).at[:BL].set(tok_flat)
    vocab_ids = jnp.arange(VOCAB_PAD, dtype=jnp.int32)
    blocks = [
        (tok_pad[k:k + ROWS, None] == vocab_ids[None, :]).astype(jnp.bfloat16)   # (ROWS, VOCAB_PAD)
        for k in range(MAX_FS)
    ]
    return jnp.concatenate(blocks, axis=1)                                       # (ROWS, K_FOLD)


@jax.jit
def textcnn_forward(tokens, packed):
    onehot = _build_shifted_onehot(tokens)
    args = (onehot, packed["w_fold"], packed["b_col"], packed["mask"],
            packed["w_fc"], packed["b_fc"])

    flops = 2 * (ROWS * K_FOLD * LANES         # fused embedding+conv matmul
                 + B_PAD * LANES * LANES)      # FC matmul
    bytes_accessed = sum(int(a.size) * a.dtype.itemsize for a in args) + B_PAD * LANES * 4

    logits_pad = pl.pallas_call(
        textcnn_kernel,
        out_shape=jax.ShapeDtypeStruct((B_PAD, LANES), jnp.float32),
        in_specs=[pl.BlockSpec(memory_space=pltpu.MemorySpace.VMEM)] * len(args),
        out_specs=pl.BlockSpec(memory_space=pltpu.MemorySpace.VMEM),
        cost_estimate=pl.CostEstimate(flops=flops, transcendentals=0,
                                      bytes_accessed=bytes_accessed),
    )(*args)
    return logits_pad[:BATCH, :NUM_CLASSES]


def reference_forward(tokens, params):
    """Pure-JAX f32 reference mirroring the PyTorch forward (eval mode)."""
    emb = jnp.take(params["embedding"], tokens, axis=0).astype(jnp.float32)  # (B, L, E)
    feats = []
    for i, fs in enumerate(FILTER_SIZES):
        w = params["conv_w"][i]          # (fs, E, F)
        b = params["conv_b"][i]          # (F,)
        l_out = SEQ_LEN - fs + 1
        conv = jnp.zeros((BATCH, l_out, NUM_FILTERS), jnp.float32)
        for k in range(fs):
            conv = conv + jnp.einsum("ble,ef->blf", emb[:, k:k + l_out, :], w[k])
        conv = jax.nn.relu(conv + b)
        feats.append(jnp.max(conv, axis=1))                    # (B, F)
    pooled = jnp.concatenate(feats, axis=1)                    # (B, FC_IN)
    return pooled @ params["fc_w"] + params["fc_b"]


def init_params(key):
    keys = jax.random.split(key, 3 + 2 * len(FILTER_SIZES))
    params = {
        "embedding": jax.random.normal(keys[0], (VOCAB_SIZE, EMBED_DIM), jnp.float32) * 0.1,
        "conv_w": [],
        "conv_b": [],
        "fc_w": jax.random.normal(keys[1], (FC_IN, NUM_CLASSES), jnp.float32) * 0.1,
        "fc_b": jax.random.normal(keys[2], (NUM_CLASSES,), jnp.float32) * 0.1,
    }
    for i, fs in enumerate(FILTER_SIZES):
        kw, kb = keys[3 + 2 * i], keys[4 + 2 * i]
        # Stored pre-transposed: (fs, E, F)  (PyTorch Conv1d weight is (F, E, fs)).
        params["conv_w"].append(
            jax.random.normal(kw, (fs, EMBED_DIM, NUM_FILTERS), jnp.float32) * 0.1
        )
        params["conv_b"].append(
            jax.random.normal(kb, (NUM_FILTERS,), jnp.float32) * 0.1
        )
    return params


if __name__ == "__main__":
    key = jax.random.PRNGKey(0)
    pkey, tkey = jax.random.split(key)
    params = init_params(pkey)
    tokens = jax.random.randint(tkey, (BATCH, SEQ_LEN), 0, VOCAB_SIZE, dtype=jnp.int32)

    packed = pack_params(params)
    out = jax.block_until_ready(textcnn_forward(tokens, packed))
    ref = jax.block_until_ready(reference_forward(tokens, params))

    assert out.shape == (BATCH, NUM_CLASSES), out.shape
    # bf16 MXU operands (per perf review) -> compare at a bf16-appropriate tolerance.
    assert jnp.allclose(out, ref, atol=2e-2, rtol=2e-2), (out, ref)
    print("KERNEL_OK")
</pallas_src>

<mosaic_0001>
module attributes {stable_mosaic.version = 11 : i64} {
  func.func @textcnn_kernel(%arg0: memref<128x256xbf16, #tpu.memory_space<vmem>>, %arg1: memref<256x128xbf16, #tpu.memory_space<vmem>>, %arg2: memref<1x128xf32, #tpu.memory_space<vmem>>, %arg3: memref<16x128xf32, #tpu.memory_space<vmem>>, %arg4: memref<128x128xbf16, #tpu.memory_space<vmem>>, %arg5: memref<1x128xf32, #tpu.memory_space<vmem>>, %arg6: memref<8x128xf32, #tpu.memory_space<vmem>>) attributes {dimension_semantics = [], scalar_prefetch = 0 : i64, scratch_operands = 0 : i64, tpu.core_type = #tpu.core_type<tc>} {
    %c0 = arith.constant 0 : index
    %c0_0 = arith.constant 0 : index
    %0 = vector.load %arg0[%c0, %c0_0] : memref<128x256xbf16, #tpu.memory_space<vmem>>, vector<128x256xbf16>
    %c0_1 = arith.constant 0 : index
    %c0_2 = arith.constant 0 : index
    %1 = vector.load %arg1[%c0_1, %c0_2] : memref<256x128xbf16, #tpu.memory_space<vmem>>, vector<256x128xbf16>
    %cst = arith.constant dense<0.000000e+00> : vector<128x128xf32>
    %2 = tpu.matmul %0, %1, %cst {dimension_numbers = #tpu.dot_dimension_numbers<[1], [0], [0], [1], [0, 0, 1, 1], [], []>} : vector<128x256xbf16>, vector<256x128xbf16>, vector<128x128xf32> -> vector<128x128xf32>
    %c0_3 = arith.constant 0 : index
    %c0_4 = arith.constant 0 : index
    %3 = vector.load %arg2[%c0_3, %c0_4] : memref<1x128xf32, #tpu.memory_space<vmem>>, vector<1x128xf32>
    %4 = vector.broadcast %3 : vector<1x128xf32> to vector<128x128xf32>
    %5 = arith.addf %2, %4 : vector<128x128xf32>
    %cst_5 = arith.constant 0.000000e+00 : f32
    %6 = vector.broadcast %cst_5 : f32 to vector<128x128xf32>
    %7 = arith.maximumf %5, %6 : vector<128x128xf32>
    %8 = vector.shape_cast %7 : vector<128x128xf32> to vector<8x16x128xf32>
    %c0_6 = arith.constant 0 : index
    %c0_7 = arith.constant 0 : index
    %9 = vector.load %arg3[%c0_6, %c0_7] : memref<16x128xf32, #tpu.memory_space<vmem>>, vector<16x128xf32>
    %10 = vector.shape_cast %9 : vector<16x128xf32> to vector<1x16x128xf32>
    %11 = vector.broadcast %10 : vector<1x16x128xf32> to vector<8x16x128xf32>
    %12 = arith.mulf %8, %11 : vector<8x16x128xf32>
    %cst_8 = arith.constant dense<0xFF800000> : vector<8x128xf32>
    %13 = vector.multi_reduction <maximumf>, %12, %cst_8 [1] : vector<8x16x128xf32> to vector<8x128xf32>
    %14 = arith.truncf %13 : vector<8x128xf32> to vector<8x128xbf16>
    %c0_9 = arith.constant 0 : index
    %c0_10 = arith.constant 0 : index
    %15 = vector.load %arg4[%c0_9, %c0_10] : memref<128x128xbf16, #tpu.memory_space<vmem>>, vector<128x128xbf16>
    %cst_11 = arith.constant dense<0.000000e+00> : vector<8x128xf32>
    %16 = tpu.matmul %14, %15, %cst_11 {dimension_numbers = #tpu.dot_dimension_numbers<[1], [0], [0], [1], [0, 0, 1, 1], [], []>} : vector<8x128xbf16>, vector<128x128xbf16>, vector<8x128xf32> -> vector<8x128xf32>
    %c0_12 = arith.constant 0 : index
    %c0_13 = arith.constant 0 : index
    %17 = vector.load %arg5[%c0_12, %c0_13] : memref<1x128xf32, #tpu.memory_space<vmem>>, vector<1x128xf32>
    %18 = vector.broadcast %17 : vector<1x128xf32> to vector<8x128xf32>
    %19 = arith.addf %16, %18 : vector<8x128xf32>
    %c0_14 = arith.constant 0 : index
    %c0_15 = arith.constant 0 : index
    %20 = vector.load %arg6[%c0_14, %c0_15] : memref<8x128xf32, #tpu.memory_space<vmem>>, vector<8x128xf32>
    tpu.vector_store %arg6[%c0_14, %c0_15], %19 {strides = array<i32>} : memref<8x128xf32, #tpu.memory_space<vmem>>, vector<8x128xf32>,
    return
  }
}

</mosaic_0001>

<llo_original>
// kernel: textcnn_forward.1
$region0: #{textcnn_forward.1}
  #allocation0 [shape = 'u32[]', space=smem, size = 0x4, offset = 0x4, fixed_abs, tag = 'smem constant byte address 0x4 - core index']
  #allocation1 [shape = 'u32[144,128]{1,0:T(1,128)}', space=vmem, size = 0x12000, scoped, tag = 'internal scratch']
  %s0 = inlined_call_operand.vmem [shape: bf16[128,256], index: 0, kind: input, shape index: {}]
  %s1 = inlined_call_operand.vmem [shape: bf16[256,128], index: 1, kind: input, shape index: {}]
  %s2 = inlined_call_operand.vmem [shape: f32[1,128], index: 2, kind: input, shape index: {}]
  %s3 = inlined_call_operand.vmem [shape: f32[16,128], index: 3, kind: input, shape index: {}]
  %s4 = inlined_call_operand.vmem [shape: bf16[128,128], index: 4, kind: input, shape index: {}]
  %s5 = inlined_call_operand.vmem [shape: f32[1,128], index: 5, kind: input, shape index: {}]
  %s6 = inlined_call_operand.vmem [shape: f32[8,128], index: 6, kind: output, shape index: {}]
  %s7 = sld [smem:[#allocation0]]
  $region34: #{textcnn_forward.1} parent=0
    _
  %s9 = ssub.s32 1, %s7
  %s10 = scalar_select 0, %s9, %s7
  // Predicated region
  $region2: #{textcnn_forward.1} parent=0 // pred_check
    _
  $region3: #{textcnn_forward.1} parent=0 // pred_check_branch
    %12 = sbr.rel (0) target = $region5
  $region4: #{textcnn_forward.1} parent=0 // pred_region
    _
  $region5: #{textcnn_forward.1} parent=0 // pred_fallthru
    _
  // Predicated region
  $region6: #{textcnn_forward.1} parent=0 // pred_check
    _
  $region7: #{textcnn_forward.1} parent=0 // pred_check_branch
    %14 = sbr.rel (0) target = $region9
  $region8: #{textcnn_forward.1} parent=0 // pred_region
    _
  $region9: #{textcnn_forward.1} parent=0 // pred_fallthru
    _
  // Predicated region
  $region10: #{textcnn_forward.1} parent=0 // pred_check
    _
  $region11: #{textcnn_forward.1} parent=0 // pred_check_branch
    %16 = sbr.rel (0) target = $region13
  $region12: #{textcnn_forward.1} parent=0 // pred_region
    _
  $region13: #{textcnn_forward.1} parent=0 // pred_fallthru
    _
  // Predicated region
  $region14: #{textcnn_forward.1} parent=0 // pred_check
    _
  $region15: #{textcnn_forward.1} parent=0 // pred_check_branch
    %18 = sbr.rel (0) target = $region17
  $region16: #{textcnn_forward.1} parent=0 // pred_region
    _
  $region17: #{textcnn_forward.1} parent=0 // pred_fallthru
    _
  // Predicated region
  $region18: #{textcnn_forward.1} parent=0 // pred_check
    _
  $region19: #{textcnn_forward.1} parent=0 // pred_check_branch
    %20 = sbr.rel (0) target = $region21
  $region20: #{textcnn_forward.1} parent=0 // pred_region
    _
  $region21: #{textcnn_forward.1} parent=0 // pred_fallthru
    _
  // Predicated region
  $region22: #{textcnn_forward.1} parent=0 // pred_check
    _
  $region23: #{textcnn_forward.1} parent=0 // pred_check_branch
    %22 = sbr.rel (0) target = $region25
  $region24: #{textcnn_forward.1} parent=0 // pred_region
    _
  $region25: #{textcnn_forward.1} parent=0 // pred_fallthru
    _
  %v24 = vld [vmem:[%s0] sm:$0xff]
  %v25 = vld [vmem:[%s0 + $0x8] sm:$0xff]
  %v26 = vld [vmem:[%s0 + $0x10] sm:$0xff]
  %v27 = vld [vmem:[%s0 + $0x18] sm:$0xff]
  %v28 = vld [vmem:[%s0 + $0x20] sm:$0xff]
  %v29 = vld [vmem:[%s0 + $0x28] sm:$0xff]
  %v30 = vld [vmem:[%s0 + $0x30] sm:$0xff]
  %v31 = vld [vmem:[%s0 + $0x38] sm:$0xff]
  %v32 = vld [vmem:[%s0 + $0x40] sm:$0xff]
  %v33 = vld [vmem:[%s0 + $0x48] sm:$0xff]
  %v34 = vld [vmem:[%s0 + $0x50] sm:$0xff]
  %v35 = vld [vmem:[%s0 + $0x58] sm:$0xff]
  %v36 = vld [vmem:[%s0 + $0x60] sm:$0xff]
  %v37 = vld [vmem:[%s0 + $0x68] sm:$0xff]
  %v38 = vld [vmem:[%s0 + $0x70] sm:$0xff]
  %v39 = vld [vmem:[%s0 + $0x78] sm:$0xff]
  %v40 = vld [vmem:[%s1] sm:$0xf]
  %v41 = vld [vmem:[%s1 + $0x4] sm:$0xf]
  %v42 = vld [vmem:[%s1 + $0x8] sm:$0xf]
  %v43 = vld [vmem:[%s1 + $0xc] sm:$0xf]
  %v44 = vld [vmem:[%s1 + $0x10] sm:$0xf]
  %v45 = vld [vmem:[%s1 + $0x14] sm:$0xf]
  %v46 = vld [vmem:[%s1 + $0x18] sm:$0xf]
  %v47 = vld [vmem:[%s1 + $0x1c] sm:$0xf]
  %v48 = vld [vmem:[%s1 + $0x20] sm:$0xf]
  %v49 = vld [vmem:[%s1 + $0x24] sm:$0xf]
  %v50 = vld [vmem:[%s1 + $0x28] sm:$0xf]
  %v51 = vld [vmem:[%s1 + $0x2c] sm:$0xf]
  %v52 = vld [vmem:[%s1 + $0x30] sm:$0xf]
  %v53 = vld [vmem:[%s1 + $0x34] sm:$0xf]
  %v54 = vld [vmem:[%s1 + $0x38] sm:$0xf]
  %v55 = vld [vmem:[%s1 + $0x3c] sm:$0xf]
  %v56 = vld [vmem:[%s1 + $0x40] sm:$0xf]
  %v57 = vld [vmem:[%s1 + $0x44] sm:$0xf]
  %v58 = vld [vmem:[%s1 + $0x48] sm:$0xf]
  %v59 = vld [vmem:[%s1 + $0x4c] sm:$0xf]
  %v60 = vld [vmem:[%s1 + $0x50] sm:$0xf]
  %v61 = vld [vmem:[%s1 + $0x54] sm:$0xf]
  %v62 = vld [vmem:[%s1 + $0x58] sm:$0xf]
  %v63 = vld [vmem:[%s1 + $0x5c] sm:$0xf]
  %v64 = vld [vmem:[%s1 + $0x60] sm:$0xf]
  %v65 = vld [vmem:[%s1 + $0x64] sm:$0xf]
  %v66 = vld [vmem:[%s1 + $0x68] sm:$0xf]
  %v67 = vld [vmem:[%s1 + $0x6c] sm:$0xf]
  %v68 = vld [vmem:[%s1 + $0x70] sm:$0xf]
  %v69 = vld [vmem:[%s1 + $0x74] sm:$0xf]
  %v70 = vld [vmem:[%s1 + $0x78] sm:$0xf]
  %v71 = vld [vmem:[%s1 + $0x7c] sm:$0xf]
  %v72 = vld [vmem:[%s2] sm:$0x1]
  %v74 = vlaneseq
  %v75 = vshrl.u32 %v74, 7
  %v76 = vsub.s32 0, %v75
  %v77 = vrot.slane %v72, %v76
  %v95 = vunpack.c.l.b16 %v24
  %v96 = vunpack.c.h.b16 %v24
  %v97 = vunpack.c.l.b16 %v25
  %v98 = vunpack.c.h.b16 %v25
  %v99 = vunpack.c.l.b16 %v26
  %v100 = vunpack.c.h.b16 %v26
  %v101 = vunpack.c.l.b16 %v27
  %v102 = vunpack.c.h.b16 %v27
  %v103 = vunpack.c.l.b16 %v28
  %v104 = vunpack.c.h.b16 %v28
  %v105 = vunpack.c.l.b16 %v29
  %v106 = vunpack.c.h.b16 %v29
  %v107 = vunpack.c.l.b16 %v30
  %v108 = vunpack.c.h.b16 %v30
  %v109 = vunpack.c.l.b16 %v31
  %v110 = vunpack.c.h.b16 %v31
  %v111 = vunpack.c.l.b16 %v32
  %v112 = vunpack.c.h.b16 %v32
  %v113 = vunpack.c.l.b16 %v33
  %v114 = vunpack.c.h.b16 %v33
  %v115 = vunpack.c.l.b16 %v34
  %v116 = vunpack.c.h.b16 %v34
  %v117 = vunpack.c.l.b16 %v35
  %v118 = vunpack.c.h.b16 %v35
  %v119 = vunpack.c.l.b16 %v36
  %v120 = vunpack.c.h.b16 %v36
  %v121 = vunpack.c.l.b16 %v37
  %v122 = vunpack.c.h.b16 %v37
  %v123 = vunpack.c.l.b16 %v38
  %v124 = vunpack.c.h.b16 %v38
  %v125 = vunpack.c.l.b16 %v39
  %v126 = vunpack.c.h.b16 %v39
  %v127 = vpack.c.b16 %v97, %v95
  %v128 = vpack.c.b16 %v98, %v96
  %v129 = vpack.c.b16 %v101, %v99
  %v130 = vpack.c.b16 %v102, %v100
  %v131 = vpack.c.b16 %v105, %v103
  %v132 = vpack.c.b16 %v106, %v104
  %v133 = vpack.c.b16 %v109, %v107
  %v134 = vpack.c.b16 %v110, %v108
  %v135 = vpack.c.b16 %v113, %v111
  %v136 = vpack.c.b16 %v114, %v112
  %v137 = vpack.c.b16 %v117, %v115
  %v138 = vpack.c.b16 %v118, %v116
  %v139 = vpack.c.b16 %v121, %v119
  %v140 = vpack.c.b16 %v122, %v120
  %v141 = vpack.c.b16 %v125, %v123
  %v142 = vpack.c.b16 %v126, %v124
  %v191 = vunpack.c.l.b16 %v40
  %v192 = vunpack.c.l.b16 %v41
  %v193 = vunpack.c.l.b16 %v42
  %v194 = vunpack.c.l.b16 %v43
  %v195 = vunpack.c.l.b16 %v44
  %v196 = vunpack.c.l.b16 %v45
  %v197 = vunpack.c.l.b16 %v46
  %v198 = vunpack.c.l.b16 %v47
  %v199 = vunpack.c.l.b16 %v48
  %v200 = vunpack.c.l.b16 %v49
  %v201 = vunpack.c.l.b16 %v50
  %v202 = vunpack.c.l.b16 %v51
  %v203 = vunpack.c.l.b16 %v52
  %v204 = vunpack.c.l.b16 %v53
  %v205 = vunpack.c.l.b16 %v54
  %v206 = vunpack.c.l.b16 %v55
  %v207 = vunpack.c.l.b16 %v56
  %v208 = vunpack.c.l.b16 %v57
  %v209 = vunpack.c.l.b16 %v58
  %v210 = vunpack.c.l.b16 %v59
  %v211 = vunpack.c.l.b16 %v60
  %v212 = vunpack.c.l.b16 %v61
  %v213 = vunpack.c.l.b16 %v62
  %v214 = vunpack.c.l.b16 %v63
  %v215 = vunpack.c.l.b16 %v64
  %v216 = vunpack.c.l.b16 %v65
  %v217 = vunpack.c.l.b16 %v66
  %v218 = vunpack.c.l.b16 %v67
  %v219 = vunpack.c.l.b16 %v68
  %v220 = vunpack.c.l.b16 %v69
  %v221 = vunpack.c.l.b16 %v70
  %v222 = vunpack.c.l.b16 %v71
  %v223 = vpack.c.b16 %v192, %v191
  %v224 = vpack.c.b16 %v194, %v193
  %v225 = vpack.c.b16 %v196, %v195
  %v226 = vpack.c.b16 %v198, %v197
  %v227 = vpack.c.b16 %v200, %v199
  %v228 = vpack.c.b16 %v202, %v201
  %v229 = vpack.c.b16 %v204, %v203
  %v230 = vpack.c.b16 %v206, %v205
  %v231 = vpack.c.b16 %v208, %v207
  %v232 = vpack.c.b16 %v210, %v209
  %v233 = vpack.c.b16 %v212, %v211
  %v234 = vpack.c.b16 %v214, %v213
  %v235 = vpack.c.b16 %v216, %v215
  %v236 = vpack.c.b16 %v218, %v217
  %v237 = vpack.c.b16 %v220, %v219
  %v238 = vpack.c.b16 %v222, %v221
  %255 = vmatprep.subr.bf16.mxu0 0
  %256 = vmatpush1.bf16.msra.mxu0 %v223
  %257 = vmatprep.subr.bf16.mxu0 0
  %258 = vmatpush1.bf16.msra.mxu0 %v224
  %259 = vmatprep.subr.bf16.mxu0 0
  %260 = vmatpush1.bf16.msra.mxu0 %v225
  %261 = vmatprep.subr.bf16.mxu0 0
  %262 = vmatpush1.bf16.msra.mxu0 %v226
  %263 = vmatprep.subr.bf16.mxu0 0
  %264 = vmatpush1.bf16.msra.mxu0 %v227
  %265 = vmatprep.subr.bf16.mxu0 0
  %266 = vmatpush1.bf16.msra.mxu0 %v228
  %267 = vmatprep.subr.bf16.mxu0 0
  %268 = vmatpush1.bf16.msra.mxu0 %v229
  %269 = vmatprep.subr.bf16.mxu0 0
  %270 = vmatpush1.bf16.msra.mxu0 %v230
  %271 = vmatprep.subr.bf16.mxu0 0
  %272 = vmatpush1.bf16.msra.mxu0 %v231
  %273 = vmatprep.subr.bf16.mxu0 0
  %274 = vmatpush1.bf16.msra.mxu0 %v232
  %275 = vmatprep.subr.bf16.mxu0 0
  %276 = vmatpush1.bf16.msra.mxu0 %v233
  %277 = vmatprep.subr.bf16.mxu0 0
  %278 = vmatpush1.bf16.msra.mxu0 %v234
  %279 = vmatprep.subr.bf16.mxu0 0
  %280 = vmatpush1.bf16.msra.mxu0 %v235
  %281 = vmatprep.subr.bf16.mxu0 0
  %282 = vmatpush1.bf16.msra.mxu0 %v236
  %283 = vmatprep.subr.bf16.mxu0 0
  %284 = vmatpush1.bf16.msra.mxu0 %v237
  %285 = vmatprep.subr.bf16.mxu0 0
  %286 = vmatpush1.bf16.msra.mxu0 %v238
  %287 = vmatprep.mubr.bf16.mxu0 %v128
  %288 = vmatmul.mubr.bf16.gmra.mrb[0].mxu0 %v127
  %v289 = vpop.f32.mrb[0].mxu0
  %v290 = vadd.f32 %v77, %v289
  %v291 = vpop.f32.mrb[0].mxu0
  %v292 = vpop.f32.mrb[0].mxu0
  %v293 = vadd.f32 %v77, %v292
  %v294 = vpop.f32.mrb[0].mxu0
  %295 = vmatprep.mubr.bf16.mxu0 %v130
  %296 = vmatmul.mubr.bf16.gmra.mrb[0].mxu0 %v129
  %v297 = vpop.f32.mrb[0].mxu0
  %v298 = vadd.f32 %v77, %v297
  %v299 = vpop.f32.mrb[0].mxu0
  %v300 = vpop.f32.mrb[0].mxu0
  %v301 = vadd.f32 %v77, %v300
  %v302 = vpop.f32.mrb[0].mxu0
  %303 = vmatprep.mubr.bf16.mxu0 %v132
  %304 = vmatmul.mubr.bf16.gmra.mrb[0].mxu0 %v131
  %v305 = vpop.f32.mrb[0].mxu0
  %v306 = vadd.f32 %v77, %v305
  %v307 = vpop.f32.mrb[0].mxu0
  %v308 = vpop.f32.mrb[0].mxu0
  %v309 = vadd.f32 %v77, %v308
  %v310 = vpop.f32.mrb[0].mxu0
  %311 = vmatprep.mubr.bf16.mxu0 %v134
  %312 = vmatmul.mubr.bf16.gmra.mrb[0].mxu0 %v133
  %v313 = vpop.f32.mrb[0].mxu0
  %v314 = vadd.f32 %v77, %v313
  %v315 = vpop.f32.mrb[0].mxu0
  %v316 = vpop.f32.mrb[0].mxu0
  %v317 = vadd.f32 %v77, %v316
  %v318 = vpop.f32.mrb[0].mxu0
  %319 = vmatprep.mubr.bf16.mxu0 %v136
  %320 = vmatmul.mubr.bf16.gmra.mrb[0].mxu0 %v135
  %v321 = vpop.f32.mrb[0].mxu0
  %v322 = vadd.f32 %v77, %v321
  %v323 = vpop.f32.mrb[0].mxu0
  %v324 = vpop.f32.mrb[0].mxu0
  %v325 = vadd.f32 %v77, %v324
  %v326 = vpop.f32.mrb[0].mxu0
  %327 = vmatprep.mubr.bf16.mxu0 %v138
  %328 = vmatmul.mubr.bf16.gmra.mrb[0].mxu0 %v137
  %v329 = vpop.f32.mrb[0].mxu0
  %v330 = vadd.f32 %v77, %v329
  %v331 = vpop.f32.mrb[0].mxu0
  %v332 = vpop.f32.mrb[0].mxu0
  %v333 = vadd.f32 %v77, %v332
  %v334 = vpop.f32.mrb[0].mxu0
  %335 = vmatprep.mubr.bf16.mxu0 %v140
  %336 = vmatmul.mubr.bf16.gmra.mrb[0].mxu0 %v139
  %v337 = vpop.f32.mrb[0].mxu0
  %v338 = vadd.f32 %v77, %v337
  %v339 = vpop.f32.mrb[0].mxu0
  %v340 = vpop.f32.mrb[0].mxu0
  %v341 = vadd.f32 %v77, %v340
  %v342 = vpop.f32.mrb[0].mxu0
  %343 = vmatprep.mubr.bf16.mxu0 %v142
  %344 = vmatmul.mubr.bf16.gmra.mrb[0].mxu0 %v141
  %v345 = vpop.f32.mrb[0].mxu0
  %v346 = vadd.f32 %v77, %v345
  %v347 = vpop.f32.mrb[0].mxu0
  %v348 = vpop.f32.mrb[0].mxu0
  %v349 = vadd.f32 %v77, %v348
  %v350 = vpop.f32.mrb[0].mxu0
  %351 = vdwg.mxu0
  %v352 = vmax.f32 %v290, 0.0
  %v353 = vmax.f32 %v293, 0.0
  %v354 = vmax.f32 %v298, 0.0
  %v355 = vmax.f32 %v301, 0.0
  %v356 = vmax.f32 %v306, 0.0
  %v357 = vmax.f32 %v309, 0.0
  %v358 = vmax.f32 %v314, 0.0
  %v359 = vmax.f32 %v317, 0.0
  %v360 = vmax.f32 %v322, 0.0
  %v361 = vmax.f32 %v325, 0.0
  %v362 = vmax.f32 %v330, 0.0
  %v363 = vmax.f32 %v333, 0.0
  %v364 = vmax.f32 %v338, 0.0
  %v365 = vmax.f32 %v341, 0.0
  %v366 = vmax.f32 %v346, 0.0
  %v367 = vmax.f32 %v349, 0.0
  %v368 = vld [vmem:[%s3] sm:$0xff]
  %v369 = vld [vmem:[%s3 + $0x8] sm:$0xff]
  %v370 = vmul.f32 %v352, %v368
  %v371 = vmul.f32 %v353, %v369
  %v372 = vmul.f32 %v354, %v368
  %v373 = vmul.f32 %v355, %v369
  %v374 = vmul.f32 %v356, %v368
  %v375 = vmul.f32 %v357, %v369
  %v376 = vmul.f32 %v358, %v368
  %v377 = vmul.f32 %v359, %v369
  %v378 = vmul.f32 %v360, %v368
  %v379 = vmul.f32 %v361, %v369
  %v380 = vmul.f32 %v362, %v368
  %v381 = vmul.f32 %v363, %v369
  %v382 = vmul.f32 %v364, %v368
  %v383 = vmul.f32 %v365, %v369
  %v384 = vmul.f32 %v366, %v368
  %v385 = vmul.f32 %v367, %v369
  %v386 = vmax.f32 %v370, %v371
  %v387 = vrot.slane %v386, 4
  %v388 = vmax.f32 %v386, %v387
  %v389 = vrot.slane %v388, 2
  %v390 = vmax.f32 %v388, %v389
  %v391 = vrot.slane %v390, 1
  %v392 = vmax.f32 %v390, %v391
  %v393 = vmax.f32 %v372, %v373
  %v394 = vrot.slane %v393, 4
  %v395 = vmax.f32 %v393, %v394
  %v396 = vrot.slane %v395, 2
  %v397 = vmax.f32 %v395, %v396
  %v398 = vrot.slane %v397, 1
  %v399 = vmax.f32 %v397, %v398
  %v400 = vmax.f32 %v374, %v375
  %v401 = vrot.slane %v400, 4
  %v402 = vmax.f32 %v400, %v401
  %v403 = vrot.slane %v402, 2
  %v404 = vmax.f32 %v402, %v403
  %v405 = vrot.slane %v404, 1
  %v406 = vmax.f32 %v404, %v405
  %v407 = vmax.f32 %v376, %v377
  %v408 = vrot.slane %v407, 4
  %v409 = vmax.f32 %v407, %v408
  %v410 = vrot.slane %v409, 2
  %v411 = vmax.f32 %v409, %v410
  %v412 = vrot.slane %v411, 1
  %v413 = vmax.f32 %v411, %v412
  %v414 = vmax.f32 %v378, %v379
  %v415 = vrot.slane %v414, 4
  %v416 = vmax.f32 %v414, %v415
  %v417 = vrot.slane %v416, 2
  %v418 = vmax.f32 %v416, %v417
  %v419 = vrot.slane %v418, 1
  %v420 = vmax.f32 %v418, %v419
  %v421 = vmax.f32 %v380, %v381
  %v422 = vrot.slane %v421, 4
  %v423 = vmax.f32 %v421, %v422
  %v424 = vrot.slane %v423, 2
  %v425 = vmax.f32 %v423, %v424
  %v426 = vrot.slane %v425, 1
  %v427 = vmax.f32 %v425, %v426
  %v428 = vmax.f32 %v382, %v383
  %v429 = vrot.slane %v428, 4
  %v430 = vmax.f32 %v428, %v429
  %v431 = vrot.slane %v430, 2
  %v432 = vmax.f32 %v430, %v431
  %v433 = vrot.slane %v432, 1
  %v434 = vmax.f32 %v432, %v433
  %v435 = vmax.f32 %v384, %v385
  %v436 = vrot.slane %v435, 4
  %v437 = vmax.f32 %v435, %v436
  %v438 = vrot.slane %v437, 2
  %v439 = vmax.f32 %v437, %v438
  %v440 = vrot.slane %v439, 1
  %v441 = vmax.f32 %v439, %v440
  %v442 = vpack.c.bf16 %v392, %v392
  %v443 = vpack.c.bf16 %v399, %v399
  %v444 = vpack.c.bf16 %v406, %v406
  %v445 = vpack.c.bf16 %v413, %v413
  %v446 = vpack.c.bf16 %v420, %v420
  %v447 = vpack.c.bf16 %v427, %v427
  %v448 = vpack.c.bf16 %v434, %v434
  %v449 = vpack.c.bf16 %v441, %v441
  %v450 = vld [vmem:[%s4] sm:$0xf]
  %v451 = vld [vmem:[%s4 + $0x4] sm:$0xf]
  %v452 = vld [vmem:[%s4 + $0x8] sm:$0xf]
  %v453 = vld [vmem:[%s4 + $0xc] sm:$0xf]
  %v454 = vld [vmem:[%s4 + $0x10] sm:$0xf]
  %v455 = vld [vmem:[%s4 + $0x14] sm:$0xf]
  %v456 = vld [vmem:[%s4 + $0x18] sm:$0xf]
  %v457 = vld [vmem:[%s4 + $0x1c] sm:$0xf]
  %v458 = vld [vmem:[%s4 + $0x20] sm:$0xf]
  %v459 = vld [vmem:[%s4 + $0x24] sm:$0xf]
  %v460 = vld [vmem:[%s4 + $0x28] sm:$0xf]
  %v461 = vld [vmem:[%s4 + $0x2c] sm:$0xf]
  %v462 = vld [vmem:[%s4 + $0x30] sm:$0xf]
  %v463 = vld [vmem:[%s4 + $0x34] sm:$0xf]
  %v464 = vld [vmem:[%s4 + $0x38] sm:$0xf]
  %v465 = vld [vmem:[%s4 + $0x3c] sm:$0xf]
  %v466 = vld [vmem:[%s5] sm:$0x1]
  %v468 = vlaneseq
  %v469 = vshrl.u32 %v468, 7
  %v470 = vsub.s32 0, %v469
  %v471 = vrot.slane %v466, %v470
  %v481 = vunpack.c.l.b16 %v442
  %v482 = vunpack.c.l.b16 %v443
  %v483 = vunpack.c.l.b16 %v444
  %v484 = vunpack.c.l.b16 %v445
  %v485 = vunpack.c.l.b16 %v446
  %v486 = vunpack.c.l.b16 %v447
  %v487 = vunpack.c.l.b16 %v448
  %v488 = vunpack.c.l.b16 %v449
  %vm489 = vcmask 1041409
  %v490 = vsel %vm489, %v482, %v481
  %vm491 = vcmask 1042434
  %v492 = vsel %vm491, %v483, %v490
  %vm493 = vcmask 1043459
  %v494 = vsel %vm493, %v484, %v492
  %vm495 = vcmask 1044484
  %v496 = vsel %vm495, %v485, %v494
  %vm497 = vcmask 1045509
  %v498 = vsel %vm497, %v486, %v496
  %vm499 = vcmask 1046534
  %v500 = vsel %vm499, %v487, %v498
  %vm501 = vcmask 1047559
  %v502 = vsel %vm501, %v488, %v500
  %v503 = vpack.c.b16 %v502, %v502
  %v521 = vunpack.c.l.b16 %v450
  %v522 = vunpack.c.l.b16 %v451
  %v523 = vunpack.c.l.b16 %v452
  %v524 = vunpack.c.l.b16 %v453
  %v525 = vunpack.c.l.b16 %v454
  %v526 = vunpack.c.l.b16 %v455
  %v527 = vunpack.c.l.b16 %v456
  %v528 = vunpack.c.l.b16 %v457
  %v529 = vunpack.c.l.b16 %v458
  %v530 = vunpack.c.l.b16 %v459
  %v531 = vunpack.c.l.b16 %v460
  %v532 = vunpack.c.l.b16 %v461
  %v533 = vunpack.c.l.b16 %v462
  %v534 = vunpack.c.l.b16 %v463
  %v535 = vunpack.c.l.b16 %v464
  %v536 = vunpack.c.l.b16 %v465
  %v537 = vpack.c.b16 %v522, %v521
  %v538 = vpack.c.b16 %v524, %v523
  %v539 = vpack.c.b16 %v526, %v525
  %v540 = vpack.c.b16 %v528, %v527
  %v541 = vpack.c.b16 %v530, %v529
  %v542 = vpack.c.b16 %v532, %v531
  %v543 = vpack.c.b16 %v534, %v533
  %v544 = vpack.c.b16 %v536, %v535
  %553 = vmatprep.subr.bf16.mxu0 0
  %554 = vmatpush1.bf16.msra.mxu0 %v537
  %555 = vmatprep.subr.bf16.mxu0 0
  %556 = vmatpush1.bf16.msra.mxu0 %v538
  %557 = vmatprep.subr.bf16.mxu0 0
  %558 = vmatpush1.bf16.msra.mxu0 %v539
  %559 = vmatprep.subr.bf16.mxu0 0
  %560 = vmatpush1.bf16.msra.mxu0 %v540
  %561 = vmatprep.subr.bf16.mxu0 0
  %562 = vmatpush1.bf16.msra.mxu0 %v541
  %563 = vmatprep.subr.bf16.mxu0 0
  %564 = vmatpush1.bf16.msra.mxu0 %v542
  %565 = vmatprep.subr.bf16.mxu0 0
  %566 = vmatpush1.bf16.msra.mxu0 %v543
  %567 = vmatprep.subr.bf16.mxu0 0
  %568 = vmatpush1.bf16.msra.mxu0 %v544
  %569 = vmatprep.subr.bf16.mxu0 0
  %570 = vmatpush1.bf16.msra.mxu0 0
  %571 = vmatprep.subr.bf16.mxu0 0
  %572 = vmatpush1.bf16.msra.mxu0 0
  %573 = vmatprep.subr.bf16.mxu0 0
  %574 = vmatpush1.bf16.msra.mxu0 0
  %575 = vmatprep.subr.bf16.mxu0 0
  %576 = vmatpush1.bf16.msra.mxu0 0
  %577 = vmatprep.subr.bf16.mxu0 0
  %578 = vmatpush1.bf16.msra.mxu0 0
  %579 = vmatprep.subr.bf16.mxu0 0
  %580 = vmatpush1.bf16.msra.mxu0 0
  %581 = vmatprep.subr.bf16.mxu0 0
  %582 = vmatpush1.bf16.msra.mxu0 0
  %583 = vmatprep.subr.bf16.mxu0 0
  %584 = vmatpush1.bf16.msra.mxu0 0
  %585 = vmatprep.mubr.bf16.mxu0 0
  %586 = vmatmul.mubr.bf16.gmra.mrb[0].mxu0 %v503
  %v587 = vpop.f32.mrb[0].mxu0
  %v588 = vadd.f32 %v471, %v587
  %v589 = vpop.f32.mrb[0].mxu0
  %v590 = vpop.f32.mrb[0].mxu0
  %v591 = vpop.f32.mrb[0].mxu0
  %592 = vdwg.mxu0
  %593 = vst [vmem:[%s6] sm:$0xff] %v588
  // Predicated region
  $region26: #{textcnn_forward.1} parent=0 // pred_check
    _
  $region27: #{textcnn_forward.1} parent=0 // pred_check_branch
    %595 = sbr.rel (0) target = $region29
  $region28: #{textcnn_forward.1} parent=0 // pred_region
    _
  $region29: #{textcnn_forward.1} parent=0 // pred_fallthru
    _
  // Predicated region
  $region30: #{textcnn_forward.1} parent=0 // pred_check
    _
  $region31: #{textcnn_forward.1} parent=0 // pred_check_branch
    %597 = sbr.rel (0) target = $region33
  $region32: #{textcnn_forward.1} parent=0 // pred_region
    _
  $region33: #{textcnn_forward.1} parent=0 // pred_fallthru
    _

</llo_original>
